<compile_context>
chip_gen: v5e
topology: v5e:2x2
jax: 0.10.0
libtpu: 0.0.40
codegen_flags: <defaults>
</compile_context>

<pallas_src>
import functools
import math

import jax
import jax.numpy as jnp
from jax.experimental import pallas as pl
from jax.experimental.pallas import tpu as pltpu


# Conservative per-grid-step VMEM accounting:
#   2 x native input block   (Pallas double buffering)
#   1 x native block temp    ((x - m) before the f32 cast)
#   2 x f32 block temps      (exp() working set)
# => ~ (3*itemsize + 8) bytes per block element.  A 36 MiB budget leaves
# ~12 MiB of the requested 48 MiB scoped VMEM for iotas/masks/compiler
# scratch; 48 MiB fits v7x's 64 MiB physical VMEM (v5e/v6e have 128 MiB).
_VMEM_LIMIT_BYTES = 48 * 1024 * 1024
_BLOCK_BUDGET_BYTES = 36 * 1024 * 1024


def _ce_loss_kernel(x_ref, o_ref, *, scale, mask_rows):
    """Process one (b_tile, row_tile, K) block; accumulate into the resident
    (b_tile, 1) f32 output block across the (last, arbitrary) row grid axis."""
    r = pl.program_id(1)
    _, rt, K = x_ref.shape

    x = x_ref[...]                                                 # native dtype

    # Numerically stable log-sum-exp over the class (lane) axis.  Max and the
    # diagonal select stay in native dtype; only exp/log/accumulate are f32.
    m = jnp.max(x, axis=-1, keepdims=True)                         # (bt, rt, 1)
    ex = jnp.exp((x - m).astype(jnp.float32))                      # (bt, rt, K) f32
    # TODO(synk): on v7x the lane reductions can saturate the XLU before HBM;
    # this sum could be offloaded to the idle MXU (dot with a ones vector).
    lse = m.astype(jnp.float32) + jnp.log(
        jnp.sum(ex, axis=-1, keepdims=True))                       # (bt, rt, 1)

    # Diagonal logits x[b, i, i]: column index == global row index of this block.
    row0 = r * rt
    lrow = jax.lax.broadcasted_iota(jnp.int32, (rt, K), 0)
    col = jax.lax.broadcasted_iota(jnp.int32, (rt, K), 1)
    eye = col == (lrow + row0)                                     # (rt, K) bool
    diag = jnp.sum(jnp.where(eye, x, jnp.zeros((), x.dtype)),
                   axis=-1, keepdims=True).astype(jnp.float32)     # (bt, rt, 1)

    contrib = lse - diag                                           # (bt, rt, 1) f32
    if mask_rows:  # static: last row block extends past the K rows (cdiv grid)
        valid = (lrow[:, :1] + row0) < K                           # (rt, 1)
        contrib = jnp.where(valid[None, :, :], contrib, 0.0)

    partial = jnp.sum(contrib, axis=1)                             # (bt, 1) f32

    @pl.when(r == 0)
    def _init():
        o_ref[...] = jnp.zeros_like(o_ref)

    o_ref[...] += partial

    @pl.when(r == pl.num_programs(1) - 1)
    def _finalize():
        o_ref[...] = o_ref[...] * jnp.float32(scale)


def _choose_tiles(B, K, itemsize):
    """Pick (b_tile, row_tile) so that one (b_tile, row_tile, K) block plus the
    kernel working set fits the VMEM budget, the (b_tile, 1) output block obeys
    the (8, 128) rule (b_tile % 8 == 0 or b_tile == B), and medium/large
    problems get >= 2 batch grid steps (megacore sharding on v7x)."""
    per_elem = 3 * itemsize + 8
    budget_elems = max(1, _BLOCK_BUDGET_BYTES // per_elem)
    min_b = B if B <= 8 else 8

    if min_b * K * K <= budget_elems:
        # Whole rows fit: no row tiling needed.
        row_tile = K
        max_b = max(min_b, budget_elems // (K * K))
        # Force >= 2 batch tiles only when the problem is big enough that the
        # extra ~0.35us/step is amortized (and megacore can actually win).
        min_tiles = 2 if (B >= 16 and B * K * K * itemsize >= (1 << 20)) else 1
        n_tiles = max(-(-B // max_b), min_tiles)
        if n_tiles == 1:
            b_tile = B
        else:
            b_tile = min(B, max(8, ((-(-B // n_tiles)) // 8) * 8))
    else:
        # Large K: small batch tile, tile the rows and accumulate per batch row.
        b_tile = min_b
        max_r = budget_elems // (b_tile * K)
        row_tile = min(K, max(8, (max_r // 8) * 8))
    return b_tile, row_tile


def ce_loss(y_pred, eval=False, b_tile=None, row_tile=None):
    """Pallas implementation of CE_loss.forward. Returns per-batch score (B,) f32."""
    B, N, K = y_pred.shape
    if N != K:
        raise ValueError("torch.eye(K) broadcast requires y_pred shaped [B, K, K]")
    if K == 1:
        raise ValueError("K == 1 makes |log(1/K)| == 0 (divide by zero in the reference)")

    itemsize = jnp.dtype(y_pred.dtype).itemsize
    auto_b, auto_r = _choose_tiles(B, K, itemsize)
    b_tile = auto_b if b_tile is None else min(int(b_tile), B)
    row_tile = auto_r if row_tile is None else min(int(row_tile), K)
    if b_tile != B and b_tile % 8 != 0:
        raise ValueError(f"b_tile must be a multiple of 8 or equal to B, got {b_tile}")
    if row_tile != K and row_tile % 8 != 0:
        raise ValueError(f"row_tile must be a multiple of 8 or equal to K, got {row_tile}")

    grid = (pl.cdiv(B, b_tile), pl.cdiv(K, row_tile))   # batch parallel, rows (reduction) last
    scale = 1.0 / (K * K * abs(math.log(1.0 / K)))
    kernel = functools.partial(_ce_loss_kernel, scale=scale,
                               mask_rows=(K % row_tile != 0))

    out = pl.pallas_call(
        kernel,
        out_shape=jax.ShapeDtypeStruct((B, 1), jnp.float32),
        grid=grid,
        in_specs=[pl.BlockSpec((b_tile, row_tile, K), lambda b, r: (b, r, 0))],
        out_specs=pl.BlockSpec((b_tile, 1), lambda b, r: (b, 0)),
        compiler_params=pltpu.CompilerParams(
            dimension_semantics=("parallel", "arbitrary"),
            vmem_limit_bytes=_VMEM_LIMIT_BYTES),
    )(y_pred)
    # `eval` flag has no effect in the reference module (both branches return score).
    return out[:, 0]


def _reference(y_pred):
    K = y_pred.shape[-1]
    logp = jax.nn.log_softmax(y_pred.astype(jnp.float32), axis=2)
    eye = jnp.eye(K, dtype=jnp.float32)
    return -(logp * eye).mean(-1).mean(-1) / abs(math.log(1.0 / K))


if __name__ == "__main__":
    # Small case consistent with the module: single grid step, b_tile == B.
    B, K = 2, 16
    y_pred = jax.random.normal(jax.random.PRNGKey(0), (B, K, K), dtype=jnp.float32)
    score = jax.block_until_ready(ce_loss(y_pred))
    ref = _reference(y_pred)
    assert score.shape == (B,)
    assert jnp.allclose(score, ref, atol=1e-5, rtol=1e-5), (score, ref)

    # Multi batch-tile, parallel batch grid (b_tile=8 -> 2 batch steps).
    B2, K2 = 16, 32
    y2 = jax.random.normal(jax.random.PRNGKey(1), (B2, K2, K2), dtype=jnp.float32)
    score2 = jax.block_until_ready(ce_loss(y2, b_tile=8))
    ref2 = _reference(y2)
    assert score2.shape == (B2,)
    assert jnp.allclose(score2, ref2, atol=1e-5, rtol=1e-5), (score2, ref2)

    # Row-tiled path with a non-dividing row tile: exercises the output-resident
    # accumulation across row steps and the row-validity mask (K % row_tile != 0).
    B3, K3 = 4, 24
    y3 = jax.random.normal(jax.random.PRNGKey(2), (B3, K3, K3), dtype=jnp.float32)
    score3 = jax.block_until_ready(ce_loss(y3, row_tile=16))
    ref3 = _reference(y3)
    assert score3.shape == (B3,)
    assert jnp.allclose(score3, ref3, atol=1e-5, rtol=1e-5), (score3, ref3)

    print("KERNEL_OK")
</pallas_src>

<mosaic_0001>
module attributes {stable_mosaic.version = 11 : i64} {
  func.func @_ce_loss_kernel(%arg0: i32, %arg1: i32, %arg2: memref<2x16x16xf32, #tpu.memory_space<vmem>>, %arg3: memref<2x1xf32, #tpu.memory_space<vmem>>) attributes {dimension_semantics = [#tpu.dimension_semantics<parallel>, #tpu.dimension_semantics<arbitrary>], iteration_bounds = array<i64: 1, 1>, scalar_prefetch = 0 : i64, scratch_operands = 0 : i64, tpu.core_type = #tpu.core_type<tc>, window_params = [{transform_indices = @transform_0, window_bounds = array<i64: 2, 16, 16>}, {transform_indices = @transform_1, window_bounds = array<i64: 2, 1>}]} {
    %c0 = arith.constant 0 : index
    %c0_0 = arith.constant 0 : index
    %c0_1 = arith.constant 0 : index
    %0 = vector.load %arg2[%c0, %c0_0, %c0_1] : memref<2x16x16xf32, #tpu.memory_space<vmem>>, vector<2x16x16xf32>
    %cst = arith.constant dense<0xFF800000> : vector<2x16xf32>
    %1 = vector.multi_reduction <maximumf>, %0, %cst [2] : vector<2x16x16xf32> to vector<2x16xf32>
    %2 = vector.shape_cast %1 : vector<2x16xf32> to vector<2x16x1xf32>
    %3 = vector.broadcast %2 : vector<2x16x1xf32> to vector<2x16x16xf32>
    %4 = arith.subf %0, %3 : vector<2x16x16xf32>
    %5 = math.exp %4 : vector<2x16x16xf32>
    %cst_2 = arith.constant dense<0.000000e+00> : vector<2x16xf32>
    %6 = vector.multi_reduction <add>, %5, %cst_2 [2] : vector<2x16x16xf32> to vector<2x16xf32>
    %7 = vector.shape_cast %6 : vector<2x16xf32> to vector<2x16x1xf32>
    %8 = math.log %7 : vector<2x16x1xf32>
    %9 = arith.addf %2, %8 : vector<2x16x1xf32>
    %c16_i32 = arith.constant 16 : i32
    %10 = arith.muli %arg1, %c16_i32 : i32
    %11 = tpu.iota {dimensions = array<i32: 0>} : vector<16x16xi32>
    %12 = tpu.iota {dimensions = array<i32: 1>} : vector<16x16xi32>
    %13 = vector.broadcast %10 : i32 to vector<16x16xi32>
    %14 = arith.addi %11, %13 : vector<16x16xi32>
    %15 = arith.cmpi eq, %12, %14 : vector<16x16xi32>
    %cst_3 = arith.constant 0.000000e+00 : f32
    %16 = vector.shape_cast %15 : vector<16x16xi1> to vector<1x16x16xi1>
    %17 = vector.broadcast %16 : vector<1x16x16xi1> to vector<2x16x16xi1>
    %18 = vector.broadcast %cst_3 : f32 to vector<2x16x16xf32>
    %19 = arith.select %17, %0, %18 : vector<2x16x16xi1>, vector<2x16x16xf32>
    %cst_4 = arith.constant dense<0.000000e+00> : vector<2x16xf32>
    %20 = vector.multi_reduction <add>, %19, %cst_4 [2] : vector<2x16x16xf32> to vector<2x16xf32>
    %21 = vector.shape_cast %20 : vector<2x16xf32> to vector<2x16x1xf32>
    %22 = arith.subf %9, %21 : vector<2x16x1xf32>
    %cst_5 = arith.constant dense<0.000000e+00> : vector<2x1xf32>
    %23 = vector.multi_reduction <add>, %22, %cst_5 [1] : vector<2x16x1xf32> to vector<2x1xf32>
    %c0_i32 = arith.constant 0 : i32
    %24 = arith.cmpi eq, %arg1, %c0_i32 : i32
    %25 = arith.extui %24 : i1 to i32
    %c0_i32_6 = arith.constant 0 : i32
    %26 = arith.cmpi ne, %25, %c0_i32_6 : i32
    scf.if %26 {
      %cst_13 = arith.constant 0.000000e+00 : f32
      %33 = vector.broadcast %cst_13 : f32 to vector<2x1xf32>
      %c0_14 = arith.constant 0 : index
      %c0_15 = arith.constant 0 : index
      %34 = vector.load %arg3[%c0_14, %c0_15] : memref<2x1xf32, #tpu.memory_space<vmem>>, vector<2x1xf32>
      tpu.vector_store %arg3[%c0_14, %c0_15], %33 {strides = array<i32>} : memref<2x1xf32, #tpu.memory_space<vmem>>, vector<2x1xf32>,
    } else {
    }
    %c0_7 = arith.constant 0 : index
    %c0_8 = arith.constant 0 : index
    %27 = vector.load %arg3[%c0_7, %c0_8] : memref<2x1xf32, #tpu.memory_space<vmem>>, vector<2x1xf32>
    %28 = arith.addf %27, %23 : vector<2x1xf32>
    %c0_9 = arith.constant 0 : index
    %c0_10 = arith.constant 0 : index
    %29 = vector.load %arg3[%c0_9, %c0_10] : memref<2x1xf32, #tpu.memory_space<vmem>>, vector<2x1xf32>
    tpu.vector_store %arg3[%c0_9, %c0_10], %28 {strides = array<i32>} : memref<2x1xf32, #tpu.memory_space<vmem>>, vector<2x1xf32>,
    %c0_i32_11 = arith.constant 0 : i32
    %30 = arith.cmpi eq, %arg1, %c0_i32_11 : i32
    %31 = arith.extui %30 : i1 to i32
    %c0_i32_12 = arith.constant 0 : i32
    %32 = arith.cmpi ne, %31, %c0_i32_12 : i32
    scf.if %32 {
      %c0_13 = arith.constant 0 : index
      %c0_14 = arith.constant 0 : index
      %33 = vector.load %arg3[%c0_13, %c0_14] : memref<2x1xf32, #tpu.memory_space<vmem>>, vector<2x1xf32>
      %cst_15 = arith.constant 0.00140888186 : f32
      %34 = vector.broadcast %cst_15 : f32 to vector<2x1xf32>
      %35 = arith.mulf %33, %34 : vector<2x1xf32>
      %c0_16 = arith.constant 0 : index
      %c0_17 = arith.constant 0 : index
      %36 = vector.load %arg3[%c0_16, %c0_17] : memref<2x1xf32, #tpu.memory_space<vmem>>, vector<2x1xf32>
      tpu.vector_store %arg3[%c0_16, %c0_17], %35 {strides = array<i32>} : memref<2x1xf32, #tpu.memory_space<vmem>>, vector<2x1xf32>,
    } else {
    }
    return
  }
  func.func @transform_0(%arg0: i32, %arg1: i32) -> (i32, i32, i32) {
    %c0_i32 = arith.constant 0 : i32
    %c0_i32_0 = arith.constant 0 : i32
    return %arg0, %arg1, %c0_i32 : i32, i32, i32
  }
  func.func @transform_1(%arg0: i32, %arg1: i32) -> (i32, i32) {
    %c0_i32 = arith.constant 0 : i32
    %c0_i32_0 = arith.constant 0 : i32
    return %arg0, %c0_i32 : i32, i32
  }
}

</mosaic_0001>

<llo_original>
// kernel: tpu_custom_call.1
$region0: #{tpu_custom_call.1}
  #allocation0 [shape = 'u32[]', space=smem, size = 0x4, offset = 0x4, fixed_abs, tag = 'smem constant byte address 0x4 - core index']
  #allocation1 [shape = 'u32[72,128]{1,0:T(1,128)}', space=vmem, size = 0x9000, scoped, tag = 'internal scratch']
  %s0 = inlined_call_operand.hbm [shape: f32[2,16,16], index: 0, kind: input, shape index: {}]
  %s1 = inlined_call_operand.vmem [shape: f32[2,1], index: 1, kind: output, shape index: {}]
  %s2 = sld [smem:[#allocation0]]
  $region26: #{tpu_custom_call.1} parent=0
    _
  %s4 = ssub.s32 1, %s2
  %s5 = scalar_select 0, %s4, %s2
  $region1: #{tpu_custom_call.1} parent=0
    #allocation2 [shape = 'u8[16384]{0}', space=vmem, size = 0x4000, scoped, tag = 'input window, operand 0, single buffered']
    #allocation3 [shape = 's32[1]{0}', space=sflag, size = 0x4, scoped, tag = 'scoped memory for tpu_custom_call.1']
    %6 = vsyncpa [#allocation3], 0
    // Predicated region
    $region2: #{tpu_custom_call.1} parent=1 // pred_check
      _
    $region3: #{tpu_custom_call.1} parent=1 // pred_check_branch
      %8 = sbr.rel (0) target = $region5
    $region4: #{tpu_custom_call.1} parent=1 // pred_region
      %10 = vsyncadd [#allocation3], 0
      %s11 = sshll.u32 %s0, 4
      %s12 = int_to_ptr.hbm [resolvable:$true] %s11
      %s13 = sshll.u32 [#allocation2], 4
      %s14 = int_to_ptr.vmem [resolvable:$true] %s13
      %19 = dma.hbm_to_vmem [thread:$0]  %s12, 512, %s14, [#allocation3], 128, 128, 8
    $region5: #{tpu_custom_call.1} parent=1 // pred_fallthru
      _
    // Predicated region
    $region6: #{tpu_custom_call.1} parent=1 // pred_check
      _
    $region7: #{tpu_custom_call.1} parent=1 // pred_check_branch
      %21 = sbr.rel (0) target = $region9
    $region8: #{tpu_custom_call.1} parent=1 // pred_region
      %23 = dma.done [#allocation3], 512
    $region9: #{tpu_custom_call.1} parent=1 // pred_fallthru
      _
    %v24 = vld [vmem:[#allocation2] sm:$0xff]
    %v25 = vld [vmem:[#allocation2 + $0x8] sm:$0xff]
    %v26 = vld [vmem:[#allocation2 + $0x10] sm:$0xff]
    %v27 = vld [vmem:[#allocation2 + $0x18] sm:$0xff]
    %vm28 = vcmask 130048
    %v29 = vsel %vm28, %v24, -inf
    %30 = vmax.xlane.f32.xlu0 %v29
    %v31 = vpop.xlane.xlu0 %30
    %v32 = vsel %vm28, %v25, -inf
    %33 = vmax.xlane.f32.xlu0 %v32
    %v34 = vpop.xlane.xlu0 %33
    %v35 = vsel %vm28, %v26, -inf
    %36 = vmax.xlane.f32.xlu0 %v35
    %v37 = vpop.xlane.xlu0 %36
    %v38 = vsel %vm28, %v27, -inf
    %39 = vmax.xlane.f32.xlu0 %v38
    %v40 = vpop.xlane.xlu0 %39
    %v41 = vsub.f32 %v24, %v31
    %v42 = vsub.f32 %v25, %v34
    %v43 = vsub.f32 %v26, %v37
    %v44 = vsub.f32 %v27, %v40
    %v45 = vmul.f32 %v41, 1.442695
    %v46 = vpow.pop %v45
    %v47 = vmul.f32 %v42, 1.442695
    %v48 = vpow.pop %v47
    %v49 = vmul.f32 %v43, 1.442695
    %v50 = vpow.pop %v49
    %v51 = vmul.f32 %v44, 1.442695
    %v52 = vpow.pop %v51
    %v53 = vsel %vm28, %v46, 0.0
    %54 = vadd.xlane.f32.xlu0 %v53
    %v55 = vpop.xlane.xlu0 %54
    %v56 = vsel %vm28, %v48, 0.0
    %57 = vadd.xlane.f32.xlu0 %v56
    %v58 = vpop.xlane.xlu0 %57
    %v59 = vsel %vm28, %v50, 0.0
    %60 = vadd.xlane.f32.xlu0 %v59
    %v61 = vpop.xlane.xlu0 %60
    %v62 = vsel %vm28, %v52, 0.0
    %63 = vadd.xlane.f32.xlu0 %v62
    %v64 = vpop.xlane.xlu0 %63
    %v65 = vlog2.pop %v55
    %v66 = vmul.f32 %v65, 0.6931472
    %v67 = vlog2.pop %v58
    %v68 = vmul.f32 %v67, 0.6931472
    %v69 = vlog2.pop %v61
    %v70 = vmul.f32 %v69, 0.6931472
    %v71 = vlog2.pop %v64
    %v72 = vmul.f32 %v71, 0.6931472
    %v73 = vadd.f32 %v31, %v66
    %v74 = vadd.f32 %v34, %v68
    %v75 = vadd.f32 %v37, %v70
    %v76 = vadd.f32 %v40, %v72
    %s77 = smul.u32 0, 16
    %v78 = vlaneseq
    %v79 = vshrl.u32 %v78, 7
    %v80 = vadd.s32 %v79, 8
    %v81 = vlaneseq
    %v82 = vand.u32 %v81, 127
    %v83 = vstv %s77
    %v84 = vadd.s32 %v79, %v83
    %v85 = vadd.s32 %v80, %v83
    %vm86 = vcmp.eq.s32.totalorder %v82, %v84
    %vm87 = vcmp.eq.s32.totalorder %v82, %v85
    %v88 = vsel %vm86, 1, 0
    %v89 = vsel %vm87, 1, 0
    %vm90 = vcmp.eq.s32.totalorder %v88, 1
    %vm91 = vcmp.eq.s32.totalorder %v89, 1
    %v92 = vsel %vm90, %v24, 0.0
    %v93 = vsel %vm91, %v25, 0.0
    %v94 = vsel %vm90, %v26, 0.0
    %v95 = vsel %vm91, %v27, 0.0
    %v96 = vsel %vm28, %v92, 0.0
    %97 = vadd.xlane.f32.xlu0 %v96
    %v98 = vpop.xlane.xlu0 %97
    %v99 = vsel %vm28, %v93, 0.0
    %100 = vadd.xlane.f32.xlu0 %v99
    %v101 = vpop.xlane.xlu0 %100
    %v102 = vsel %vm28, %v94, 0.0
    %103 = vadd.xlane.f32.xlu0 %v102
    %v104 = vpop.xlane.xlu0 %103
    %v105 = vsel %vm28, %v95, 0.0
    %106 = vadd.xlane.f32.xlu0 %v105
    %v107 = vpop.xlane.xlu0 %106
    %v108 = vsub.f32 %v73, %v98
    %v109 = vsub.f32 %v74, %v101
    %v110 = vsub.f32 %v75, %v104
    %v111 = vsub.f32 %v76, %v107
    %v112 = vadd.f32 %v108, %v109
    %v113 = vrot.slane %v112, 4
    %v114 = vadd.f32 %v112, %v113
    %v115 = vrot.slane %v114, 2
    %v116 = vadd.f32 %v114, %v115
    %v117 = vrot.slane %v116, 1
    %v118 = vadd.f32 %v116, %v117
    %v119 = vadd.f32 %v110, %v111
    %v120 = vrot.slane %v119, 4
    %v121 = vadd.f32 %v119, %v120
    %v122 = vrot.slane %v121, 2
    %v123 = vadd.f32 %v121, %v122
    %v124 = vrot.slane %v123, 1
    %v125 = vadd.f32 %v123, %v124
    %p126 = scmp.eq.s32.totalorder 0, 0
    // Predicated region
    $region10: #{tpu_custom_call.1} parent=1 // pred_check
      %p127 = pneg %p126
    $region11: #{tpu_custom_call.1} parent=1 // pred_check_branch
      %129 = sbr.rel (%p127) target = $region13
    $region12: #{tpu_custom_call.1} parent=1 // pred_region
      %vm130 = vcmask 1024
      %131 = vst.msk [vmem:[%s1] sm:$0x3] %vm130, 0.0
    $region13: #{tpu_custom_call.1} parent=1 // pred_fallthru
      _
    %v132 = vld [vmem:[%s1] sm:$0x3]
    %vm135 = vcmask 1041409
    %v136 = vsel %vm135, %v125, %v118
    %v138 = vadd.f32 %v132, %v136
    %vm139 = vcmask 1024
    %140 = vst.msk [vmem:[%s1] sm:$0x3] %vm139, %v138
    // Predicated region
    $region14: #{tpu_custom_call.1} parent=1 // pred_check
      %p141 = pneg %p126
    $region15: #{tpu_custom_call.1} parent=1 // pred_check_branch
      %143 = sbr.rel (%p141) target = $region17
    $region16: #{tpu_custom_call.1} parent=1 // pred_region
      %v144 = vld [vmem:[%s1] sm:$0x3]
      %v145 = vmul.f32 %v144, 0.0014088819
      %146 = vst.msk [vmem:[%s1] sm:$0x3] %vm139, %v145
    $region17: #{tpu_custom_call.1} parent=1 // pred_fallthru
      _
    // Predicated region
    $region18: #{tpu_custom_call.1} parent=1 // pred_check
      _
    $region19: #{tpu_custom_call.1} parent=1 // pred_check_branch
      %148 = sbr.rel (0) target = $region21
    $region20: #{tpu_custom_call.1} parent=1 // pred_region
      _
    $region21: #{tpu_custom_call.1} parent=1 // pred_fallthru
      _
    // Predicated region
    $region22: #{tpu_custom_call.1} parent=1 // pred_check
      _
    $region23: #{tpu_custom_call.1} parent=1 // pred_check_branch
      %150 = sbr.rel (0) target = $region25
    $region24: #{tpu_custom_call.1} parent=1 // pred_region
      _
    $region25: #{tpu_custom_call.1} parent=1 // pred_fallthru
      _
    %151 = vsyncpa [#allocation3], 1

</llo_original>
